<compile_context>
chip_gen: v7x
topology: tpu7x:2x2x1
jax: 0.10.0
libtpu: 0.0.40
codegen_flags: <defaults>
</compile_context>

<pallas_src>
import functools

import jax
import jax.numpy as jnp
from jax import lax
from jax.experimental import pallas as pl
from jax.experimental.pallas import tpu as pltpu

_LANES = 128
_MAX_BLOCK_ROWS = 2048        # 2048 * 128 * 4 B = 1 MiB per f32 input tile
_TARGET_CHUNK_ROWS = 256      # in-kernel accumulation chunk size (rows)
_VMEM_LIMIT_BYTES = 32 * 1024 * 1024


def _sublane_multiple(*dtypes):
    """Sublane granularity implied by the narrowest (packed) input dtype."""
    mult = 8
    for dt in dtypes:
        itemsize = jnp.dtype(dt).itemsize
        mult = max(mult, {4: 8, 2: 16, 1: 32}.get(itemsize, 8))
    return mult


def _pick_chunk_rows(block_rows, sub_mult):
    """Largest multiple of sub_mult <= _TARGET_CHUNK_ROWS that divides block_rows."""
    if block_rows <= _TARGET_CHUNK_ROWS:
        return block_rows
    c = (_TARGET_CHUNK_ROWS // sub_mult) * sub_mult
    while c > sub_mult and block_rows % c != 0:
        c -= sub_mult
    return c


def _reference(x, y):
    """Plain-JAX fallback (tiny inputs / element counts not a multiple of 128)."""
    xf = x.astype(jnp.float32)
    yf = y.astype(jnp.float32)
    d = jnp.sqrt(xf) - jnp.sqrt(yf)
    return jnp.mean(d * d)


def _make_wd_kernel(rows, block_rows, chunk_rows, needs_mask, single_sqrt):
    """Build the per-block kernel; all shape/config parameters are static."""
    nchunks = block_rows // chunk_rows

    def kernel(x_ref, y_ref, partial_ref):
        pid = pl.program_id(0)

        def chunk(c, acc):
            r0 = c * chunk_rows
            if not isinstance(r0, int):
                r0 = pl.multiple_of(r0, chunk_rows)
            xs = x_ref[pl.ds(r0, chunk_rows), :].astype(jnp.float32)
            ys = y_ref[pl.ds(r0, chunk_rows), :].astype(jnp.float32)
            if single_sqrt:
                # One EUP sqrt per element (v7x EUP-bound rescue); not
                # bit-identical to the two-sqrt form.
                sq = xs + ys - 2.0 * jnp.sqrt(xs * ys)
            else:
                d = jnp.sqrt(xs) - jnp.sqrt(ys)
                sq = d * d
            if needs_mask:
                # Select away rows past the end of the array (the last block
                # may be partially out-of-bounds; OOB data is unspecified and
                # may produce NaN under sqrt, so use a select, not a multiply).
                local_row = lax.broadcasted_iota(jnp.int32, sq.shape, 0)
                global_row = pid * block_rows + r0 + local_row
                sq = jnp.where(global_row < rows, sq, 0.0)
            # Whole-vreg VPU accumulation: (chunk_rows,128)->(cr//8,8,128).
            return acc + jnp.sum(sq.reshape(chunk_rows // 8, 8, _LANES), axis=0)

        acc0 = jnp.zeros((8, _LANES), jnp.float32)
        if nchunks == 1:
            partial_ref[...] = chunk(0, acc0)
        else:
            partial_ref[...] = lax.fori_loop(
                0, nchunks, chunk, acc0, unroll=(nchunks <= 8))

    return kernel


def wd_loss(x, y, *, max_block_rows=_MAX_BLOCK_ROWS, min_kernel_elems=1 << 20,
            use_core_parallel=False, single_sqrt=False):
    """mean((sqrt(x) - sqrt(y))**2) computed with a Pallas TPU kernel."""
    assert x.shape == y.shape, "x and y must have the same shape"
    total_n = int(x.size)

    # Fallbacks: tiny inputs (launch + pipeline warm-up dominates) or element
    # counts that are not a multiple of 128 (a lane-dense 2-D view would need
    # a padding copy == an extra HBM pass; XLA's fused reduce is optimal there).
    if total_n == 0 or total_n < min_kernel_elems or total_n % _LANES != 0:
        return _reference(x, y)

    rows = total_n // _LANES
    sub_mult = _sublane_multiple(x.dtype, y.dtype)
    block_rows = min(int(max_block_rows), (rows // sub_mult) * sub_mult)
    if block_rows <= 0:
        return _reference(x, y)
    chunk_rows = _pick_chunk_rows(block_rows, sub_mult)
    num_blocks = pl.cdiv(rows, block_rows)
    needs_mask = (rows % block_rows) != 0

    # Zero-copy lane-dense views (reshape of a contiguous array is a bitcast).
    x2 = x.reshape(rows, _LANES)
    y2 = y.reshape(rows, _LANES)

    kernel = _make_wd_kernel(rows, block_rows, chunk_rows, needs_mask, single_sqrt)

    in_bytes = (x2.size * jnp.dtype(x2.dtype).itemsize
                + y2.size * jnp.dtype(y2.dtype).itemsize)
    out_bytes = num_blocks * 8 * _LANES * 4
    cost = pl.CostEstimate(
        flops=4 * total_n,
        transcendentals=(1 if single_sqrt else 2) * total_n,
        bytes_accessed=in_bytes + out_bytes,
    )

    # Blocks are fully independent (each writes its own partial tile), so the
    # grid axis can be sharded across v7x's two TensorCores with CORE_PARALLEL.
    dim_sem = (pltpu.CORE_PARALLEL,) if use_core_parallel else ("parallel",)

    partials = pl.pallas_call(
        kernel,
        out_shape=jax.ShapeDtypeStruct((num_blocks * 8, _LANES), jnp.float32),
        grid_spec=pltpu.PrefetchScalarGridSpec(
            num_scalar_prefetch=0,
            grid=(num_blocks,),
            in_specs=[
                pl.BlockSpec((block_rows, _LANES), lambda i: (i, 0)),
                pl.BlockSpec((block_rows, _LANES), lambda i: (i, 0)),
            ],
            # Each grid step owns its own lane-dense (8,128) output tile --
            # no resident accumulator, no serial SMEM chain.
            out_specs=pl.BlockSpec((8, _LANES), lambda i: (i, 0)),
        ),
        compiler_params=pltpu.CompilerParams(
            dimension_semantics=dim_sem,
            vmem_limit_bytes=_VMEM_LIMIT_BYTES,
        ),
        cost_estimate=cost,
    )(x2, y2)

    # Tiny final cross-lane reduction + mean in plain JAX.
    return jnp.sum(partials) / jnp.float32(total_n)


if __name__ == "__main__":
    key = jax.random.PRNGKey(0)
    kx, ky = jax.random.split(key)

    # NCHW inputs, non-negative (sqrt domain), matching the PyTorch module.
    shape = (2, 4, 16, 16)
    x = jax.random.uniform(kx, shape, dtype=jnp.float32)
    y = jax.random.uniform(ky, shape, dtype=jnp.float32)

    loss_fn = jax.jit(functools.partial(wd_loss, min_kernel_elems=0))
    loss = loss_fn(x, y)
    jax.block_until_ready(loss)

    ref = jnp.mean((jnp.sqrt(x) - jnp.sqrt(y)) ** 2)
    assert jnp.allclose(loss, ref, rtol=1e-6, atol=1e-6), (loss, ref)

    # Second check: bf16 inputs + forced small block -> multi-block grid with
    # a partial last block, exercising the in-kernel tail-masking path.
    shape2 = (2, 4, 24, 16)   # 3072 elements = 24 rows of 128
    x2 = jax.random.uniform(kx, shape2, dtype=jnp.float32).astype(jnp.bfloat16)
    y2 = jax.random.uniform(ky, shape2, dtype=jnp.float32).astype(jnp.bfloat16)
    loss2_fn = jax.jit(functools.partial(wd_loss, min_kernel_elems=0,
                                         max_block_rows=16))
    loss2 = loss2_fn(x2, y2)
    jax.block_until_ready(loss2)

    xf2 = x2.astype(jnp.float32)
    yf2 = y2.astype(jnp.float32)
    ref2 = jnp.mean((jnp.sqrt(xf2) - jnp.sqrt(yf2)) ** 2)
    assert jnp.allclose(loss2, ref2, rtol=1e-5, atol=1e-6), (loss2, ref2)

    print("KERNEL_OK")
</pallas_src>

<mosaic_0001>
module attributes {stable_mosaic.version = 11 : i64} {
  func.func @kernel(%arg0: i32, %arg1: memref<16x128xf32, #tpu.memory_space<vmem>>, %arg2: memref<16x128xf32, #tpu.memory_space<vmem>>, %arg3: memref<8x128xf32, #tpu.memory_space<vmem>>) attributes {dimension_semantics = [#tpu.dimension_semantics<parallel>], iteration_bounds = array<i64: 1>, scalar_prefetch = 0 : i64, scratch_operands = 0 : i64, tpu.core_type = #tpu.core_type<tc>, window_params = [{transform_indices = @transform_0, window_bounds = array<i64: 16, 128>}, {transform_indices = @transform_1, window_bounds = array<i64: 16, 128>}, {transform_indices = @transform_2, window_bounds = array<i64: 8, 128>}]} {
    %cst = arith.constant 0.000000e+00 : f32
    %0 = vector.broadcast %cst : f32 to vector<8x128xf32>
    %c0 = arith.constant 0 : index
    %c0_0 = arith.constant 0 : index
    %1 = vector.load %arg1[%c0, %c0_0] : memref<16x128xf32, #tpu.memory_space<vmem>>, vector<16x128xf32>
    %c0_1 = arith.constant 0 : index
    %c0_2 = arith.constant 0 : index
    %2 = vector.load %arg2[%c0_1, %c0_2] : memref<16x128xf32, #tpu.memory_space<vmem>>, vector<16x128xf32>
    %3 = math.sqrt %1 : vector<16x128xf32>
    %4 = math.sqrt %2 : vector<16x128xf32>
    %5 = arith.subf %3, %4 : vector<16x128xf32>
    %6 = arith.mulf %5, %5 : vector<16x128xf32>
    %7 = vector.shape_cast %6 : vector<16x128xf32> to vector<2x8x128xf32>
    %cst_3 = arith.constant dense<0.000000e+00> : vector<8x128xf32>
    %8 = vector.multi_reduction <add>, %7, %cst_3 [0] : vector<2x8x128xf32> to vector<8x128xf32>
    %9 = arith.addf %0, %8 : vector<8x128xf32>
    %c0_4 = arith.constant 0 : index
    %c0_5 = arith.constant 0 : index
    %10 = vector.load %arg3[%c0_4, %c0_5] : memref<8x128xf32, #tpu.memory_space<vmem>>, vector<8x128xf32>
    tpu.vector_store %arg3[%c0_4, %c0_5], %9 {strides = array<i32>} : memref<8x128xf32, #tpu.memory_space<vmem>>, vector<8x128xf32>,
    return
  }
  func.func @transform_0(%arg0: i32) -> (i32, i32) {
    %c0_i32 = arith.constant 0 : i32
    %c0_i32_0 = arith.constant 0 : i32
    return %arg0, %c0_i32 : i32, i32
  }
  func.func @transform_1(%arg0: i32) -> (i32, i32) {
    %c0_i32 = arith.constant 0 : i32
    %c0_i32_0 = arith.constant 0 : i32
    return %arg0, %c0_i32 : i32, i32
  }
  func.func @transform_2(%arg0: i32) -> (i32, i32) {
    %c0_i32 = arith.constant 0 : i32
    %c0_i32_0 = arith.constant 0 : i32
    return %arg0, %c0_i32 : i32, i32
  }
}

</mosaic_0001>

<llo_original>
// kernel: wd_loss.1
$region0: #{wd_loss.1}
  #allocation0 [shape = 'u32[]', space=smem, size = 0x4, offset = 0x4, fixed_abs, tag = 'smem constant byte address 0x4 - core index']
  #allocation1 [shape = 'u32[144,128]{1,0:T(1,128)}', space=vmem, size = 0x12000, scoped, tag = 'internal scratch']
  %s0 = inlined_call_operand.vmem [shape: f32[16,128], index: 0, kind: input, shape index: {}]
  %s1 = inlined_call_operand.vmem [shape: f32[16,128], index: 1, kind: input, shape index: {}]
  %s2 = inlined_call_operand.vmem [shape: f32[8,128], index: 2, kind: output, shape index: {}]
  %s3 = sld [smem:[#allocation0]]
  $region18: #{wd_loss.1} parent=0
    _
  %s5 = ssub.s32 1, %s3
  %s6 = scalar_select 0, %s5, %s3
  // Predicated region
  $region2: #{wd_loss.1} parent=0 // pred_check
    _
  $region3: #{wd_loss.1} parent=0 // pred_check_branch
    %8 = sbr.rel (0) target = $region5
  $region4: #{wd_loss.1} parent=0 // pred_region
    _
  $region5: #{wd_loss.1} parent=0 // pred_fallthru
    _
  // Predicated region
  $region6: #{wd_loss.1} parent=0 // pred_check
    _
  $region7: #{wd_loss.1} parent=0 // pred_check_branch
    %10 = sbr.rel (0) target = $region9
  $region8: #{wd_loss.1} parent=0 // pred_region
    _
  $region9: #{wd_loss.1} parent=0 // pred_fallthru
    _
  %v11 = vld [vmem:[%s0] sm:$0xff]
  %v12 = vld [vmem:[%s0 + $0x8] sm:$0xff]
  %v13 = vld [vmem:[%s1] sm:$0xff]
  %v14 = vld [vmem:[%s1 + $0x8] sm:$0xff]
  %v15 = vrsqrt.pop %v11
  %v16 = vmul.f32 %v11, %v15
  %vm17 = vcmp.eq.f32.partialorder %v11, inf
  %v18 = vsel %vm17, %v11, %v16
  %vm19 = vcmp.eq.f32.partialorder %v11, 0.0
  %v20 = vand.u32 %v11, 2147483648
  %v21 = vsel %vm19, %v20, %v18
  %v22 = vrsqrt.pop %v12
  %v23 = vmul.f32 %v12, %v22
  %vm24 = vcmp.eq.f32.partialorder %v12, inf
  %v25 = vsel %vm24, %v12, %v23
  %vm26 = vcmp.eq.f32.partialorder %v12, 0.0
  %v27 = vand.u32 %v12, 2147483648
  %v28 = vsel %vm26, %v27, %v25
  %v29 = vrsqrt.pop %v13
  %v30 = vmul.f32 %v13, %v29
  %vm31 = vcmp.eq.f32.partialorder %v13, inf
  %v32 = vsel %vm31, %v13, %v30
  %vm33 = vcmp.eq.f32.partialorder %v13, 0.0
  %v34 = vand.u32 %v13, 2147483648
  %v35 = vsel %vm33, %v34, %v32
  %v36 = vrsqrt.pop %v14
  %v37 = vmul.f32 %v14, %v36
  %vm38 = vcmp.eq.f32.partialorder %v14, inf
  %v39 = vsel %vm38, %v14, %v37
  %vm40 = vcmp.eq.f32.partialorder %v14, 0.0
  %v41 = vand.u32 %v14, 2147483648
  %v42 = vsel %vm40, %v41, %v39
  %v43 = vsub.f32 %v21, %v35
  %v44 = vsub.f32 %v28, %v42
  %v45 = vmul.f32 %v43, %v43
  %v46 = vmul.f32 %v44, %v44
  %v47 = vadd.f32 %v45, %v46
  %v48 = vadd.f32 %v47, 0.0
  %49 = vst [vmem:[%s2] sm:$0xff] %v48
  // Predicated region
  $region10: #{wd_loss.1} parent=0 // pred_check
    _
  $region11: #{wd_loss.1} parent=0 // pred_check_branch
    %51 = sbr.rel (0) target = $region13
  $region12: #{wd_loss.1} parent=0 // pred_region
    _
  $region13: #{wd_loss.1} parent=0 // pred_fallthru
    _
  // Predicated region
  $region14: #{wd_loss.1} parent=0 // pred_check
    _
  $region15: #{wd_loss.1} parent=0 // pred_check_branch
    %53 = sbr.rel (0) target = $region17
  $region16: #{wd_loss.1} parent=0 // pred_region
    _
  $region17: #{wd_loss.1} parent=0 // pred_fallthru
    _

</llo_original>
